<compile_context>
chip_gen: v7x
topology: tpu7x:2x2x1
jax: 0.10.0
libtpu: 0.0.40
codegen_flags: <defaults>
</compile_context>

<pallas_src>
import functools

import jax
import jax.numpy as jnp
from jax import lax
from jax.experimental import pallas as pl
from jax.experimental.pallas import tpu as pltpu

DEFAULT_TILE = 256          # tokens per grid step (review: amortize per-step overhead)
MIN_DMA_ROW_BYTES = 2048    # below this, keep the table VMEM-resident (one-hot path)
_ISSUE_UNROLL = 8           # DMA-issue loop unroll factor


def _round_up(x, m):
    return (x + m - 1) // m * m


def _vmem_limit(nbytes):
    # Keep headroom above actual need; >= 32 MiB, capped well under physical VMEM.
    return int(min(100 * 1024 * 1024, max(32 * 1024 * 1024, int(nbytes) + (4 << 20))))


# ----------------------------------------------------------------------------
# Path 1: HBM row-gather (large rows).  One DMA per token, straight into out_ref.
# ----------------------------------------------------------------------------
def _dma_gather_kernel(ids_ref, table_ref, out_ref, sem, *, tile, scale):
    # ids_ref:   (n_pad,) int32 in SMEM (scalar prefetch) -- flat token ids.
    # table_ref: (V, D) embedding table, left in HBM (memory_space=pl.ANY).
    # out_ref:   (tile, D) VMEM output block -- DMA destination, no scratch bounce.
    # sem:       single DMA semaphore shared by all row copies of this tile.
    base = pl.program_id(0) * tile

    def issue_rows(j0):
        # Unrolled so SMEM id loads, address math and descriptor pushes co-issue.
        for u in range(_ISSUE_UNROLL):
            j = j0 + u
            row = ids_ref[base + j]
            pltpu.make_async_copy(table_ref.at[row], out_ref.at[j], sem).start()

    n_blocks = tile // _ISSUE_UNROLL
    if n_blocks > 0:
        def body(b, carry):
            issue_rows(b * _ISSUE_UNROLL)
            return carry
        lax.fori_loop(0, n_blocks, body, 0)
    for j in range(n_blocks * _ISSUE_UNROLL, tile):   # remainder (empty: tile % 8 == 0)
        row = ids_ref[base + j]
        pltpu.make_async_copy(table_ref.at[row], out_ref.at[j], sem).start()

    # Single combined wait: DMA semaphores are byte-counted, so one wait for the
    # whole (tile, D) block covers all `tile` row copies (tile x D x bytes).
    pltpu.make_async_copy(out_ref, out_ref, sem).wait()

    if scale != 1.0:   # trace-time: unscaled case is pure DMA, no VPU pass at all.
        out_ref[...] = (out_ref[...].astype(jnp.float32)
                        * jnp.float32(scale)).astype(out_ref.dtype)


def _lookup_hbm_gather(table, flat_ids_padded, n, tile, num_tiles, scale, vmem_limit):
    _, d = table.shape
    kernel = functools.partial(_dma_gather_kernel, tile=tile, scale=scale)
    return pl.pallas_call(
        kernel,
        out_shape=jax.ShapeDtypeStruct((n, d), table.dtype),   # exact shape, no slice
        grid_spec=pltpu.PrefetchScalarGridSpec(
            num_scalar_prefetch=1,                          # flat ids -> SMEM
            grid=(num_tiles,),
            in_specs=[pl.BlockSpec(memory_space=pl.ANY)],   # table stays in HBM
            out_specs=pl.BlockSpec((tile, d), lambda t, ids: (t, 0)),
            scratch_shapes=[pltpu.SemaphoreType.DMA(())],
        ),
        compiler_params=pltpu.CompilerParams(
            dimension_semantics=("parallel",),
            vmem_limit_bytes=vmem_limit),
    )(flat_ids_padded, table)


# ----------------------------------------------------------------------------
# Path 2: small table -> VMEM-resident table, one-hot MXU lookup per tile.
# ----------------------------------------------------------------------------
def _onehot_kernel(ids_ref, table_ref, out_ref, *, scale):
    # ids_ref:   (tile, 1) int32 VMEM block.
    # table_ref: (V, D) full table, VMEM-resident (same block every grid step).
    # out_ref:   (tile, D) VMEM output block.
    tile = out_ref.shape[0]
    vocab = table_ref.shape[0]
    onehot = (ids_ref[...] ==
              lax.broadcasted_iota(jnp.int32, (tile, vocab), 1)).astype(table_ref.dtype)
    acc = jnp.dot(onehot, table_ref[...], preferred_element_type=jnp.float32)
    if scale != 1.0:
        acc = acc * jnp.float32(scale)
    out_ref[...] = acc.astype(out_ref.dtype)


def _lookup_small_table(table, flat_ids_padded, n, tile, num_tiles, scale, vmem_limit):
    v, d = table.shape
    ids2d = flat_ids_padded.reshape(num_tiles * tile, 1)
    kernel = functools.partial(_onehot_kernel, scale=scale)
    return pl.pallas_call(
        kernel,
        out_shape=jax.ShapeDtypeStruct((n, d), table.dtype),
        grid=(num_tiles,),
        in_specs=[pl.BlockSpec((tile, 1), lambda t: (t, 0)),
                  pl.BlockSpec((v, d), lambda t: (0, 0))],
        out_specs=pl.BlockSpec((tile, d), lambda t: (t, 0)),
        compiler_params=pltpu.CompilerParams(
            dimension_semantics=("parallel",),
            vmem_limit_bytes=vmem_limit),
    )(ids2d, table)


# ----------------------------------------------------------------------------
# Dispatch + SharedEmbedding.forward equivalent.
# ----------------------------------------------------------------------------
def _embedding_lookup(table, ids, scale):
    """out[...] = table[ids] * scale, shape ids.shape + (D,)."""
    orig_shape = ids.shape
    v, d = table.shape
    flat = ids.reshape(-1).astype(jnp.int32)
    n = int(flat.shape[0])
    itemsize = jnp.dtype(table.dtype).itemsize

    tile = min(DEFAULT_TILE, _round_up(n, 8))
    num_tiles = int(pl.cdiv(n, tile))
    n_pad = num_tiles * tile
    if n_pad != n:
        # Tiny int32 pad only; the (n, D) output is emitted exactly (no out[:n] copy).
        flat = jnp.pad(flat, (0, n_pad - n))

    block_bytes = tile * d * itemsize
    scale = float(scale)

    if d * itemsize < MIN_DMA_ROW_BYTES:
        vmem_limit = _vmem_limit(4 * block_bytes + v * d * itemsize)
        out = _lookup_small_table(table, flat, n, tile, num_tiles, scale, vmem_limit)
    else:
        vmem_limit = _vmem_limit(4 * block_bytes)
        out = _lookup_hbm_gather(table, flat, n, tile, num_tiles, scale, vmem_limit)
    return out.reshape(orig_shape + (d,))


def shared_embedding_forward(table, input_ids, decoder_input_ids,
                             encoder_embed_scale=None,
                             decoder_embed_scale=None):
    """JAX/Pallas equivalent of SharedEmbedding.forward.

    The same shared `table` is used for both streams; per-stream results are
    identical to the original concat -> lookup -> split, without the split copies.
    """
    # PyTorch truthiness: None or 0.0 scale means "do not scale".
    enc_s = float(encoder_embed_scale) if encoder_embed_scale else 1.0
    dec_s = float(decoder_embed_scale) if decoder_embed_scale else 1.0

    enc_emb = dec_emb = None
    if input_ids is not None:
        enc_emb = _embedding_lookup(table, input_ids, enc_s)
    if decoder_input_ids is not None:
        dec_emb = _embedding_lookup(table, decoder_input_ids, dec_s)
    return enc_emb, dec_emb


if __name__ == "__main__":
    key = jax.random.PRNGKey(0)
    k1, k2, k3, k4, k5, k6 = jax.random.split(key, 6)

    # --- Case 1: small table (64x128 f32, 512 B rows) -> VMEM one-hot path ----
    vocab, hidden = 64, 128
    batch, seq_enc, seq_dec = 2, 8, 8
    shared_weight = jax.random.normal(k1, (vocab, hidden), jnp.float32)
    input_ids = jax.random.randint(k2, (batch, seq_enc), 0, vocab, jnp.int32)
    decoder_input_ids = jax.random.randint(k3, (batch, seq_dec), 0, vocab, jnp.int32)

    enc_scale, dec_scale = 2.0, 0.5
    enc_emb, dec_emb = shared_embedding_forward(
        shared_weight, input_ids, decoder_input_ids,
        encoder_embed_scale=enc_scale, decoder_embed_scale=dec_scale)
    jax.block_until_ready((enc_emb, dec_emb))

    assert enc_emb.shape == (batch, seq_enc, hidden)
    assert dec_emb.shape == (batch, seq_dec, hidden)
    assert jnp.allclose(enc_emb, shared_weight[input_ids] * enc_scale, atol=1e-5)
    assert jnp.allclose(dec_emb, shared_weight[decoder_input_ids] * dec_scale, atol=1e-5)

    # Decoder-only path, no scale (truthiness: None => unscaled embeddings).
    none_enc, only_dec = shared_embedding_forward(shared_weight, None, decoder_input_ids)
    jax.block_until_ready(only_dec)
    assert none_enc is None
    assert jnp.allclose(only_dec, shared_weight[decoder_input_ids], atol=1e-5)

    # --- Case 2: 2 KiB rows (512x512 f32) -> HBM row-DMA gather path ----------
    vocab2, hidden2 = 512, 512
    shared_weight2 = jax.random.normal(k4, (vocab2, hidden2), jnp.float32)
    ids_e = jax.random.randint(k5, (batch, seq_enc), 0, vocab2, jnp.int32)
    ids_d = jax.random.randint(k6, (batch, seq_dec), 0, vocab2, jnp.int32)

    e2, d2 = shared_embedding_forward(
        shared_weight2, ids_e, ids_d,
        encoder_embed_scale=1.5, decoder_embed_scale=None)
    jax.block_until_ready((e2, d2))
    assert e2.shape == (batch, seq_enc, hidden2)
    assert d2.shape == (batch, seq_dec, hidden2)
    assert jnp.allclose(e2, shared_weight2[ids_e] * 1.5, atol=1e-5)
    assert jnp.allclose(d2, shared_weight2[ids_d], atol=1e-5)

    print("KERNEL_OK")
</pallas_src>

<mosaic_0001>
module attributes {stable_mosaic.version = 11 : i64} {
  func.func @_onehot_kernel(%arg0: i32, %arg1: memref<16x1xi32, #tpu.memory_space<vmem>>, %arg2: memref<64x128xf32, #tpu.memory_space<vmem>>, %arg3: memref<16x128xf32, #tpu.memory_space<vmem>>) attributes {dimension_semantics = [#tpu.dimension_semantics<parallel>], iteration_bounds = array<i64: 1>, scalar_prefetch = 0 : i64, scratch_operands = 0 : i64, tpu.core_type = #tpu.core_type<tc>, window_params = [{transform_indices = @transform_0, window_bounds = array<i64: 16, 1>}, {pipeline_mode = #tpu.pipeline_mode<synchronous>, transform_indices = @transform_1, window_bounds = array<i64: 64, 128>}, {transform_indices = @transform_2, window_bounds = array<i64: 16, 128>}]} {
    %c0 = arith.constant 0 : index
    %c0_0 = arith.constant 0 : index
    %0 = vector.load %arg1[%c0, %c0_0] : memref<16x1xi32, #tpu.memory_space<vmem>>, vector<16x1xi32>
    %1 = tpu.iota {dimensions = array<i32: 1>} : vector<16x64xi32>
    %2 = vector.broadcast %0 : vector<16x1xi32> to vector<16x64xi32>
    %3 = arith.cmpi eq, %2, %1 : vector<16x64xi32>
    %4 = arith.extui %3 : vector<16x64xi1> to vector<16x64xi32>
    %5 = arith.sitofp %4 : vector<16x64xi32> to vector<16x64xf32>
    %c0_1 = arith.constant 0 : index
    %c0_2 = arith.constant 0 : index
    %6 = vector.load %arg2[%c0_1, %c0_2] : memref<64x128xf32, #tpu.memory_space<vmem>>, vector<64x128xf32>
    %cst = arith.constant dense<0.000000e+00> : vector<16x128xf32>
    %7 = tpu.matmul %5, %6, %cst {dimension_numbers = #tpu.dot_dimension_numbers<[1], [0], [0], [1], [0, 0, 1, 1], [], []>} : vector<16x64xf32>, vector<64x128xf32>, vector<16x128xf32> -> vector<16x128xf32>
    %cst_3 = arith.constant 2.000000e+00 : f32
    %8 = vector.broadcast %cst_3 : f32 to vector<16x128xf32>
    %9 = arith.mulf %7, %8 : vector<16x128xf32>
    %c0_4 = arith.constant 0 : index
    %c0_5 = arith.constant 0 : index
    %10 = vector.load %arg3[%c0_4, %c0_5] : memref<16x128xf32, #tpu.memory_space<vmem>>, vector<16x128xf32>
    tpu.vector_store %arg3[%c0_4, %c0_5], %9 {strides = array<i32>} : memref<16x128xf32, #tpu.memory_space<vmem>>, vector<16x128xf32>,
    return
  }
  func.func @transform_0(%arg0: i32) -> (i32, i32) {
    %c0_i32 = arith.constant 0 : i32
    %c0_i32_0 = arith.constant 0 : i32
    return %arg0, %c0_i32 : i32, i32
  }
  func.func @transform_1(%arg0: i32) -> (i32, i32) {
    %c0_i32 = arith.constant 0 : i32
    %c0_i32_0 = arith.constant 0 : i32
    %c0_i32_1 = arith.constant 0 : i32
    return %c0_i32, %c0_i32_0 : i32, i32
  }
  func.func @transform_2(%arg0: i32) -> (i32, i32) {
    %c0_i32 = arith.constant 0 : i32
    %c0_i32_0 = arith.constant 0 : i32
    return %arg0, %c0_i32 : i32, i32
  }
}

</mosaic_0001>

<llo_original>
// kernel: tpu_custom_call.1
$region0: #{tpu_custom_call.1}
  #allocation0 [shape = 'u32[]', space=smem, size = 0x4, offset = 0x4, fixed_abs, tag = 'smem constant byte address 0x4 - core index']
  #allocation1 [shape = 'u32[144,128]{1,0:T(1,128)}', space=vmem, size = 0x12000, scoped, tag = 'internal scratch']
  %s0 = inlined_call_operand.vmem [shape: s32[16,1], index: 0, kind: input, shape index: {}]
  %s1 = inlined_call_operand.hbm [shape: f32[64,128], index: 1, kind: input, shape index: {}]
  %s2 = inlined_call_operand.hbm [shape: f32[16,128], index: 2, kind: output, shape index: {}]
  %s3 = sld [smem:[#allocation0]]
  $region22: #{tpu_custom_call.1} parent=0
    _
  %s5 = ssub.s32 1, %s3
  %s6 = scalar_select 0, %s5, %s3
  $region1: #{tpu_custom_call.1} parent=0
    #allocation2 [shape = 'u8[32768]{0}', space=vmem, size = 0x8000, scoped, tag = 'input window, operand 1, single buffered']
    #allocation3 [shape = 's32[1]{0}', space=sflag, size = 0x4, scoped, tag = 'scoped memory for tpu_custom_call.1']
    #allocation4 [shape = 's32[1]{0}', space=sflag, size = 0x4, scoped, tag = 'scoped memory for tpu_custom_call.1']
    #allocation5 [shape = 'u8[8192]{0}', space=vmem, size = 0x2000, scoped, tag = 'output window, operand 0, single buffered']
    %7 = vsyncpa [#allocation3], 0
    %8 = vsyncpa [#allocation4], 0
    // Predicated region
    $region2: #{tpu_custom_call.1} parent=1 // pred_check
      _
    $region3: #{tpu_custom_call.1} parent=1 // pred_check_branch
      %10 = sbr.rel (0) target = $region5
    $region4: #{tpu_custom_call.1} parent=1 // pred_region
      _
    $region5: #{tpu_custom_call.1} parent=1 // pred_fallthru
      _
    // Predicated region
    $region6: #{tpu_custom_call.1} parent=1 // pred_check
      _
    $region7: #{tpu_custom_call.1} parent=1 // pred_check_branch
      %12 = sbr.rel (0) target = $region9
    $region8: #{tpu_custom_call.1} parent=1 // pred_region
      %s14 = ssub.s32 1024, 1024
      %15 = vsyncadd [#allocation3], %s14
      %s16 = sshll.u32 [#allocation2], 4
      %s17 = int_to_ptr.vmem [resolvable:$true] %s16
      %22 = dma.hbm_to_vmem [thread:$0]  %s1, 1024, %s17, [#allocation3], 128, 128, 8
    $region9: #{tpu_custom_call.1} parent=1 // pred_fallthru
      _
    // Predicated region
    $region10: #{tpu_custom_call.1} parent=1 // pred_check
      _
    $region11: #{tpu_custom_call.1} parent=1 // pred_check_branch
      %24 = sbr.rel (0) target = $region13
    $region12: #{tpu_custom_call.1} parent=1 // pred_region
      %25 = dma.done [#allocation3], 1024
    $region13: #{tpu_custom_call.1} parent=1 // pred_fallthru
      _
    %v26 = vld [vmem:[%s0] sm:$0xff]
    %v27 = vld [vmem:[%s0 + $0x8] sm:$0xff]
    %v28 = vlaneseq
    %v29 = vand.u32 %v28, 127
    %30 = vset.pattern.permute.xlu0 0
    %31 = vperm.xlu0 %30, %v26
    %v32 = vpop.permute.xlu0 %31
    %33 = vset.pattern.permute.xlu0 0
    %34 = vperm.xlu0 %33, %v27
    %v35 = vpop.permute.xlu0 %34
    %vm36 = vcmp.eq.s32.totalorder %v32, %v29
    %vm37 = vcmp.eq.s32.totalorder %v35, %v29
    %v38 = vsel %vm36, 1, 0
    %v39 = vsel %vm37, 1, 0
    %v40 = vcvt.s32.f32 %v38
    %v41 = vcvt.s32.f32 %v39
    %v42 = vld [vmem:[#allocation2] sm:$0xff]
    %v43 = vld [vmem:[#allocation2 + $0x8] sm:$0xff]
    %v44 = vld [vmem:[#allocation2 + $0x10] sm:$0xff]
    %v45 = vld [vmem:[#allocation2 + $0x18] sm:$0xff]
    %v46 = vld [vmem:[#allocation2 + $0x20] sm:$0xff]
    %v47 = vld [vmem:[#allocation2 + $0x28] sm:$0xff]
    %v48 = vld [vmem:[#allocation2 + $0x30] sm:$0xff]
    %v49 = vld [vmem:[#allocation2 + $0x38] sm:$0xff]
    %vm50 = vcmask 523264
    %v52 = vsel %vm50, %v40, 0
    %v55 = vsel %vm50, %v41, 0
    %57 = vmatprep.subr.mxu0 0.0
    %58 = vmatpush1.msra.mxu0 %v42
    %59 = vmatprep.subr.mxu0 0.0
    %60 = vmatpush1.msra.mxu0 %v43
    %61 = vmatprep.subr.mxu0 0.0
    %62 = vmatpush1.msra.mxu0 %v44
    %63 = vmatprep.subr.mxu0 0.0
    %64 = vmatpush1.msra.mxu0 %v45
    %65 = vmatprep.subr.mxu0 0.0
    %66 = vmatpush1.msra.mxu0 %v46
    %67 = vmatprep.subr.mxu0 0.0
    %68 = vmatpush1.msra.mxu0 %v47
    %69 = vmatprep.subr.mxu0 0.0
    %70 = vmatpush1.msra.mxu0 %v48
    %71 = vmatprep.subr.mxu0 0.0
    %72 = vmatpush1.msra.mxu0 %v49
    %73 = vmatprep.subr.mxu0 0.0
    %74 = vmatpush1.msra.mxu0 0.0
    %75 = vmatprep.subr.mxu0 0.0
    %76 = vmatpush1.msra.mxu0 0.0
    %77 = vmatprep.subr.mxu0 0.0
    %78 = vmatpush1.msra.mxu0 0.0
    %79 = vmatprep.subr.mxu0 0.0
    %80 = vmatpush1.msra.mxu0 0.0
    %81 = vmatprep.subr.mxu0 0.0
    %82 = vmatpush1.msra.mxu0 0.0
    %83 = vmatprep.subr.mxu0 0.0
    %84 = vmatpush1.msra.mxu0 0.0
    %85 = vmatprep.subr.mxu0 0.0
    %86 = vmatpush1.msra.mxu0 0.0
    %87 = vmatprep.subr.mxu0 0.0
    %88 = vmatpush1.msra.mxu0 0.0
    %89 = vmatprep.subr.mxu0 0.0
    %90 = vmatpush1.msra.mxu0 0.0
    %91 = vmatprep.subr.mxu0 0.0
    %92 = vmatpush1.msra.mxu0 0.0
    %93 = vmatprep.subr.mxu0 0.0
    %94 = vmatpush1.msra.mxu0 0.0
    %95 = vmatprep.subr.mxu0 0.0
    %96 = vmatpush1.msra.mxu0 0.0
    %97 = vmatprep.subr.mxu0 0.0
    %98 = vmatpush1.msra.mxu0 0.0
    %99 = vmatprep.subr.mxu0 0.0
    %100 = vmatpush1.msra.mxu0 0.0
    %101 = vmatprep.subr.mxu0 0.0
    %102 = vmatpush1.msra.mxu0 0.0
    %103 = vmatprep.subr.mxu0 0.0
    %104 = vmatpush1.msra.mxu0 0.0
    %105 = vmatprep.subr.mxu0 0.0
    %106 = vmatpush1.msra.mxu0 0.0
    %107 = vmatprep.subr.mxu0 0.0
    %108 = vmatpush1.msra.mxu0 0.0
    %109 = vmatprep.subr.mxu0 0.0
    %110 = vmatpush1.msra.mxu0 0.0
    %111 = vmatprep.subr.mxu0 0.0
    %112 = vmatpush1.msra.mxu0 0.0
    %113 = vmatprep.subr.mxu0 0.0
    %114 = vmatpush1.msra.mxu0 0.0
    %115 = vmatprep.subr.mxu0 0.0
    %116 = vmatpush1.msra.mxu0 0.0
    %117 = vmatprep.subr.mxu0 0.0
    %118 = vmatpush1.msra.mxu0 0.0
    %119 = vmatprep.subr.mxu0 0.0
    %120 = vmatpush1.msra.mxu0 0.0
    %121 = vmatprep.mubr.f32.mxu0 0.0
    %122 = vmatmul.mubr.f32.gmra.mrb[0].mxu0 %v52
    %v123 = vpop.f32.mrb[0].mxu0
    %v124 = vadd.f32 0.0, %v123
    %v125 = vpop.f32.mrb[0].mxu0
    %126 = vmatprep.mubr.f32.mxu0 0.0
    %127 = vmatmul.mubr.f32.gmra.mrb[0].mxu0 %v55
    %v128 = vpop.f32.mrb[0].mxu0
    %v129 = vadd.f32 0.0, %v128
    %v130 = vpop.f32.mrb[0].mxu0
    %131 = vdwg.mxu0
    %v132 = vmul.f32 %v124, 2.0
    %v133 = vmul.f32 %v129, 2.0
    %134 = vst [vmem:[#allocation5] sm:$0xff] %v132
    %135 = vst [vmem:[#allocation5 + $0x8] sm:$0xff] %v133
    // Predicated region
    $region14: #{tpu_custom_call.1} parent=1 // pred_check
      _
    $region15: #{tpu_custom_call.1} parent=1 // pred_check_branch
      %137 = sbr.rel (0) target = $region17
    $region16: #{tpu_custom_call.1} parent=1 // pred_region
      %s139 = ssub.s32 256, 256
      %140 = vsyncadd [#allocation4], %s139
      %s141 = sshll.u32 [#allocation5], 4
      %s142 = int_to_ptr.vmem [resolvable:$true] %s141
      %147 = dma.vmem_to_hbm [thread:$0]  %s142, 256, %s2, [#allocation4], 128, 128, 8
    $region17: #{tpu_custom_call.1} parent=1 // pred_fallthru
      _
    // Predicated region
    $region18: #{tpu_custom_call.1} parent=1 // pred_check
      _
    $region19: #{tpu_custom_call.1} parent=1 // pred_check_branch
      %149 = sbr.rel (0) target = $region21
    $region20: #{tpu_custom_call.1} parent=1 // pred_region
      %150 = dma.done [#allocation4], 256
    $region21: #{tpu_custom_call.1} parent=1 // pred_fallthru
      _
    %151 = vsyncpa [#allocation3], 1
    %152 = vsyncpa [#allocation4], 1

</llo_original>
